<compile_context>
chip_gen: v5e
topology: v5e:2x2
jax: 0.10.0
libtpu: 0.0.40
codegen_flags: <defaults>
</compile_context>

<pallas_src>
import jax
import jax.numpy as jnp
from jax.experimental import pallas as pl
from jax.experimental.pallas import tpu as pltpu

DROP_P = 0.1
KEEP_SCALE = 1.0 / (1.0 - DROP_P)
DROP_THRESHOLD = int(round(DROP_P * (1 << 32)))  # keep iff hash_bits >= threshold
LEAKY_SLOPE = 0.01  # nn.LeakyReLU() default negative_slope

MAX_TILE_B = 256   # max batch tile (rows) per grid step
FEAT = 128         # lane-padded feature width for all activations / weights


def _round_up(n, m):
    return ((n + m - 1) // m) * m


def _rc_mix(shape, row_offset_u32):
    """Layer-independent (row, col) mixing term of the dropout hash.

    Hoisted out of the per-layer loop: computed once per tile and reused by all
    five dropout masks (XOR with the per-layer constant happens in _hash_bits).
    """
    rows = jax.lax.broadcasted_iota(jnp.int32, shape, 0).astype(jnp.uint32)
    cols = jax.lax.broadcasted_iota(jnp.int32, shape, 1).astype(jnp.uint32)
    rows = rows + row_offset_u32
    return (rows * jnp.uint32(0x85EBCA6B)) ^ (cols * jnp.uint32(0xC2B2AE35))


def _hash_bits(seed_u32, layer, rc_mix):
    """Deterministic per-element uint32 hash of (seed, layer, global_row, col)."""
    x = seed_u32 ^ (jnp.uint32(layer + 1) * jnp.uint32(0x9E3779B9)) ^ rc_mix
    # splitmix32-style finalizer
    x = (x ^ (x >> jnp.uint32(16))) * jnp.uint32(0x7FEB352D)
    x = (x ^ (x >> jnp.uint32(15))) * jnp.uint32(0x846CA68B)
    x = x ^ (x >> jnp.uint32(16))
    return x


def _leaky_relu(x):
    return jnp.where(x >= 0, x, LEAKY_SLOPE * x)


def _dropout(x, seed_u32, layer, rc_mix):
    bits = _hash_bits(seed_u32, layer, rc_mix)
    keep = bits >= jnp.uint32(DROP_THRESHOLD)
    return jnp.where(keep, x * jnp.float32(KEEP_SCALE), jnp.float32(0.0))


def multinsc_kernel(seed_ref,
                    x_ref,
                    w1_ref, b1_ref,
                    w2_ref, b2_ref,
                    w3_ref, b3_ref,
                    w4_ref, b4_ref,
                    w5_ref, b5_ref,
                    wo_ref, bo_ref,
                    out_ref):
    tile_b = x_ref.shape[0]
    seed_u32 = seed_ref[0].astype(jnp.uint32)
    # Global row offset of this batch tile -> unique dropout mask per tile.
    row_off = (pl.program_id(0) * tile_b).astype(jnp.uint32)
    # Hoisted row/col hash mix, shared by all 5 dropout layers of this tile.
    rc_mix = _rc_mix((tile_b, FEAT), row_off)

    h = x_ref[...]

    # fc1..fc5: Linear -> LeakyReLU -> Dropout   (static unroll of 5 layers)
    layer_refs = ((w1_ref, b1_ref), (w2_ref, b2_ref), (w3_ref, b3_ref),
                  (w4_ref, b4_ref), (w5_ref, b5_ref))
    for layer, (w_ref, b_ref) in enumerate(layer_refs):
        h = jnp.dot(h, w_ref[...], preferred_element_type=jnp.float32) + b_ref[...]
        h = _leaky_relu(h)
        h = _dropout(h, seed_u32, layer, rc_mix)

    # out: Linear -> ReLU   (lane-dense (tile_b, 128) store)
    o = jnp.dot(h, wo_ref[...], preferred_element_type=jnp.float32) + bo_ref[...]
    out_ref[...] = jnp.maximum(o, 0.0)


def multinsc_forward(x, params, seed, max_tile_b=MAX_TILE_B):
    """x: (B, input_size) float32; params: list of (W, b), W (in, out), b (1, out)."""
    B, in_size = x.shape
    out_size = params[-1][0].shape[1]

    # Adaptive batch tile: sublane-aligned, capped at max_tile_b.
    tile_b = max(8, min(max_tile_b, _round_up(B, 8)))
    b_pad = _round_up(B, tile_b)

    # Pad batch rows and all feature dims to 128 lanes (lane-dense loads/stores).
    x_pad = jnp.zeros((b_pad, FEAT), jnp.float32).at[:B, :in_size].set(x)

    flat_params = []
    for w, b in params:
        fi, fo = w.shape
        w_p = jnp.zeros((FEAT, FEAT), jnp.float32).at[:fi, :fo].set(w)
        b_p = jnp.zeros((1, FEAT), jnp.float32).at[:, :fo].set(b.reshape(1, -1))
        flat_params.extend([w_p, b_p])

    seed_arr = jnp.asarray([seed], dtype=jnp.int32)

    act_spec = pl.BlockSpec((tile_b, FEAT), lambda i: (i, 0))
    w_spec = pl.BlockSpec((FEAT, FEAT), lambda i: (0, 0))     # VMEM-resident
    b_spec = pl.BlockSpec((1, FEAT), lambda i: (0, 0))        # VMEM-resident
    smem_spec = pl.BlockSpec(memory_space=pltpu.MemorySpace.SMEM)

    in_specs = [smem_spec, act_spec]
    for _ in params:
        in_specs.extend([w_spec, b_spec])

    out_pad = pl.pallas_call(
        multinsc_kernel,
        out_shape=jax.ShapeDtypeStruct((b_pad, FEAT), jnp.float32),
        grid=(b_pad // tile_b,),
        in_specs=in_specs,
        out_specs=act_spec,
        compiler_params=pltpu.CompilerParams(
            dimension_semantics=("parallel",),
        ),
    )(seed_arr, x_pad, *flat_params)

    return out_pad[:B, :out_size]


def reference_forward(x, params, seed):
    """Pure-JAX reference using the same deterministic dropout hash."""
    seed_u32 = jnp.uint32(seed)
    h = x
    rc_mix = None
    for layer, (w, b) in enumerate(params[:-1]):
        h = jnp.dot(h, w, precision=jax.lax.Precision.HIGHEST) + b
        h = _leaky_relu(h)
        if rc_mix is None:  # all hidden activations share the same shape
            rc_mix = _rc_mix(h.shape, jnp.uint32(0))
        h = _dropout(h, seed_u32, layer, rc_mix)
    wo, bo = params[-1]
    o = jnp.dot(h, wo, precision=jax.lax.Precision.HIGHEST) + bo
    return jnp.maximum(o, 0.0)


def init_params(key, input_size, hidden_size, output_size):
    """Deterministic init mimicking PyTorch Linear (uniform +/- 1/sqrt(fan_in))."""
    sizes = [(input_size, hidden_size)] + [(hidden_size, hidden_size)] * 4 \
            + [(hidden_size, output_size)]
    params = []
    for (fan_in, fan_out) in sizes:
        key, kw, kb = jax.random.split(key, 3)
        bound = 1.0 / (fan_in ** 0.5)
        w = jax.random.uniform(kw, (fan_in, fan_out), jnp.float32, -bound, bound)
        b = jax.random.uniform(kb, (1, fan_out), jnp.float32, -bound, bound)
        params.append((w, b))
    return params


if __name__ == "__main__":
    input_size = 8      # n_states
    hidden_size = 32    # neurons per layer
    output_size = 6     # n_stations * n_classes (3 * 2)
    batch = 4

    key = jax.random.PRNGKey(0)
    kx, kp = jax.random.split(key)
    x = jax.random.normal(kx, (batch, input_size), dtype=jnp.float32)
    params = init_params(kp, input_size, hidden_size, output_size)

    out = multinsc_forward(x, params, seed=0)
    out = jax.block_until_ready(out)

    ref = reference_forward(x, params, seed=0)

    assert out.shape == (batch, output_size)
    assert bool(jnp.all(out >= 0.0))                      # final ReLU
    assert bool(jnp.allclose(out, ref, atol=1e-3, rtol=1e-3))
    print("KERNEL_OK")
</pallas_src>

<mosaic_0001>
module attributes {stable_mosaic.version = 11 : i64} {
  func.func @multinsc_kernel(%arg0: i32, %arg1: memref<1xi32, #tpu.memory_space<smem>>, %arg2: memref<8x128xf32, #tpu.memory_space<vmem>>, %arg3: memref<128x128xf32, #tpu.memory_space<vmem>>, %arg4: memref<1x128xf32, #tpu.memory_space<vmem>>, %arg5: memref<128x128xf32, #tpu.memory_space<vmem>>, %arg6: memref<1x128xf32, #tpu.memory_space<vmem>>, %arg7: memref<128x128xf32, #tpu.memory_space<vmem>>, %arg8: memref<1x128xf32, #tpu.memory_space<vmem>>, %arg9: memref<128x128xf32, #tpu.memory_space<vmem>>, %arg10: memref<1x128xf32, #tpu.memory_space<vmem>>, %arg11: memref<128x128xf32, #tpu.memory_space<vmem>>, %arg12: memref<1x128xf32, #tpu.memory_space<vmem>>, %arg13: memref<128x128xf32, #tpu.memory_space<vmem>>, %arg14: memref<1x128xf32, #tpu.memory_space<vmem>>, %arg15: memref<8x128xf32, #tpu.memory_space<vmem>>) attributes {dimension_semantics = [#tpu.dimension_semantics<parallel>], iteration_bounds = array<i64: 1>, scalar_prefetch = 0 : i64, scratch_operands = 0 : i64, tpu.core_type = #tpu.core_type<tc>, window_params = [{transform_indices = @transform_0, window_bounds = array<i64: 1>}, {transform_indices = @transform_1, window_bounds = array<i64: 8, 128>}, {pipeline_mode = #tpu.pipeline_mode<synchronous>, transform_indices = @transform_2, window_bounds = array<i64: 128, 128>}, {pipeline_mode = #tpu.pipeline_mode<synchronous>, transform_indices = @transform_3, window_bounds = array<i64: 1, 128>}, {pipeline_mode = #tpu.pipeline_mode<synchronous>, transform_indices = @transform_4, window_bounds = array<i64: 128, 128>}, {pipeline_mode = #tpu.pipeline_mode<synchronous>, transform_indices = @transform_5, window_bounds = array<i64: 1, 128>}, {pipeline_mode = #tpu.pipeline_mode<synchronous>, transform_indices = @transform_6, window_bounds = array<i64: 128, 128>}, {pipeline_mode = #tpu.pipeline_mode<synchronous>, transform_indices = @transform_7, window_bounds = array<i64: 1, 128>}, {pipeline_mode = #tpu.pipeline_mode<synchronous>, transform_indices = @transform_8, window_bounds = array<i64: 128, 128>}, {pipeline_mode = #tpu.pipeline_mode<synchronous>, transform_indices = @transform_9, window_bounds = array<i64: 1, 128>}, {pipeline_mode = #tpu.pipeline_mode<synchronous>, transform_indices = @transform_10, window_bounds = array<i64: 128, 128>}, {pipeline_mode = #tpu.pipeline_mode<synchronous>, transform_indices = @transform_11, window_bounds = array<i64: 1, 128>}, {pipeline_mode = #tpu.pipeline_mode<synchronous>, transform_indices = @transform_12, window_bounds = array<i64: 128, 128>}, {pipeline_mode = #tpu.pipeline_mode<synchronous>, transform_indices = @transform_13, window_bounds = array<i64: 1, 128>}, {transform_indices = @transform_14, window_bounds = array<i64: 8, 128>}]} {
    %c0 = arith.constant 0 : index
    %0 = memref.load %arg1[%c0] : memref<1xi32, #tpu.memory_space<smem>>
    %c8_i32 = arith.constant 8 : i32
    %1 = arith.muli %arg0, %c8_i32 : i32
    %2 = tpu.iota {dimensions = array<i32: 0>} : vector<8x128xi32>
    %3 = tpu.iota {dimensions = array<i32: 1>} : vector<8x128xi32>
    %4 = vector.broadcast %1 : i32 to vector<8x128xi32>
    %5 = arith.addi %2, %4 : vector<8x128xi32>
    %c-2048144789_i32 = arith.constant -2048144789 : i32
    %6 = vector.broadcast %c-2048144789_i32 : i32 to vector<8x128xi32>
    %7 = arith.muli %5, %6 : vector<8x128xi32>
    %c-1028477387_i32 = arith.constant -1028477387 : i32
    %8 = vector.broadcast %c-1028477387_i32 : i32 to vector<8x128xi32>
    %9 = arith.muli %3, %8 : vector<8x128xi32>
    %10 = arith.xori %7, %9 : vector<8x128xi32>
    %c0_0 = arith.constant 0 : index
    %c0_1 = arith.constant 0 : index
    %11 = vector.load %arg2[%c0_0, %c0_1] : memref<8x128xf32, #tpu.memory_space<vmem>>, vector<8x128xf32>
    %c0_2 = arith.constant 0 : index
    %c0_3 = arith.constant 0 : index
    %12 = vector.load %arg3[%c0_2, %c0_3] : memref<128x128xf32, #tpu.memory_space<vmem>>, vector<128x128xf32>
    %cst = arith.constant dense<0.000000e+00> : vector<8x128xf32>
    %13 = tpu.matmul %11, %12, %cst {dimension_numbers = #tpu.dot_dimension_numbers<[1], [0], [0], [1], [0, 0, 1, 1], [], []>} : vector<8x128xf32>, vector<128x128xf32>, vector<8x128xf32> -> vector<8x128xf32>
    %c0_4 = arith.constant 0 : index
    %c0_5 = arith.constant 0 : index
    %14 = vector.load %arg4[%c0_4, %c0_5] : memref<1x128xf32, #tpu.memory_space<vmem>>, vector<1x128xf32>
    %15 = vector.broadcast %14 : vector<1x128xf32> to vector<8x128xf32>
    %16 = arith.addf %13, %15 : vector<8x128xf32>
    %cst_6 = arith.constant 0.000000e+00 : f32
    %17 = vector.broadcast %cst_6 : f32 to vector<8x128xf32>
    %18 = arith.cmpf oge, %16, %17 : vector<8x128xf32>
    %cst_7 = arith.constant 0.00999999977 : f32
    %19 = vector.broadcast %cst_7 : f32 to vector<8x128xf32>
    %20 = arith.mulf %19, %16 : vector<8x128xf32>
    %21 = arith.select %18, %16, %20 : vector<8x128xi1>, vector<8x128xf32>
    %c1_i32 = arith.constant 1 : i32
    %c-1640531527_i32 = arith.constant -1640531527 : i32
    %22 = arith.muli %c1_i32, %c-1640531527_i32 : i32
    %23 = arith.xori %0, %22 : i32
    %24 = vector.broadcast %23 : i32 to vector<8x128xi32>
    %25 = arith.xori %24, %10 : vector<8x128xi32>
    %c16_i32 = arith.constant 16 : i32
    %26 = vector.broadcast %c16_i32 : i32 to vector<8x128xi32>
    %27 = arith.shrui %25, %26 : vector<8x128xi32>
    %28 = arith.xori %25, %27 : vector<8x128xi32>
    %c2146121005_i32 = arith.constant 2146121005 : i32
    %29 = vector.broadcast %c2146121005_i32 : i32 to vector<8x128xi32>
    %30 = arith.muli %28, %29 : vector<8x128xi32>
    %c15_i32 = arith.constant 15 : i32
    %31 = vector.broadcast %c15_i32 : i32 to vector<8x128xi32>
    %32 = arith.shrui %30, %31 : vector<8x128xi32>
    %33 = arith.xori %30, %32 : vector<8x128xi32>
    %c-2073254261_i32 = arith.constant -2073254261 : i32
    %34 = vector.broadcast %c-2073254261_i32 : i32 to vector<8x128xi32>
    %35 = arith.muli %33, %34 : vector<8x128xi32>
    %c16_i32_8 = arith.constant 16 : i32
    %36 = vector.broadcast %c16_i32_8 : i32 to vector<8x128xi32>
    %37 = arith.shrui %35, %36 : vector<8x128xi32>
    %38 = arith.xori %35, %37 : vector<8x128xi32>
    %c429496730_i32 = arith.constant 429496730 : i32
    %39 = vector.broadcast %c429496730_i32 : i32 to vector<8x128xi32>
    %40 = arith.cmpi uge, %38, %39 : vector<8x128xi32>
    %cst_9 = arith.constant 1.11111116 : f32
    %41 = vector.broadcast %cst_9 : f32 to vector<8x128xf32>
    %42 = arith.mulf %21, %41 : vector<8x128xf32>
    %cst_10 = arith.constant 0.000000e+00 : f32
    %43 = vector.broadcast %cst_10 : f32 to vector<8x128xf32>
    %44 = arith.select %40, %42, %43 : vector<8x128xi1>, vector<8x128xf32>
    %c0_11 = arith.constant 0 : index
    %c0_12 = arith.constant 0 : index
    %45 = vector.load %arg5[%c0_11, %c0_12] : memref<128x128xf32, #tpu.memory_space<vmem>>, vector<128x128xf32>
    %cst_13 = arith.constant dense<0.000000e+00> : vector<8x128xf32>
    %46 = tpu.matmul %44, %45, %cst_13 {dimension_numbers = #tpu.dot_dimension_numbers<[1], [0], [0], [1], [0, 0, 1, 1], [], []>} : vector<8x128xf32>, vector<128x128xf32>, vector<8x128xf32> -> vector<8x128xf32>
    %c0_14 = arith.constant 0 : index
    %c0_15 = arith.constant 0 : index
    %47 = vector.load %arg6[%c0_14, %c0_15] : memref<1x128xf32, #tpu.memory_space<vmem>>, vector<1x128xf32>
    %48 = vector.broadcast %47 : vector<1x128xf32> to vector<8x128xf32>
    %49 = arith.addf %46, %48 : vector<8x128xf32>
    %cst_16 = arith.constant 0.000000e+00 : f32
    %50 = vector.broadcast %cst_16 : f32 to vector<8x128xf32>
    %51 = arith.cmpf oge, %49, %50 : vector<8x128xf32>
    %cst_17 = arith.constant 0.00999999977 : f32
    %52 = vector.broadcast %cst_17 : f32 to vector<8x128xf32>
    %53 = arith.mulf %52, %49 : vector<8x128xf32>
    %54 = arith.select %51, %49, %53 : vector<8x128xi1>, vector<8x128xf32>
    %c2_i32 = arith.constant 2 : i32
    %c-1640531527_i32_18 = arith.constant -1640531527 : i32
    %55 = arith.muli %c2_i32, %c-1640531527_i32_18 : i32
    %56 = arith.xori %0, %55 : i32
    %57 = vector.broadcast %56 : i32 to vector<8x128xi32>
    %58 = arith.xori %57, %10 : vector<8x128xi32>
    %c16_i32_19 = arith.constant 16 : i32
    %59 = vector.broadcast %c16_i32_19 : i32 to vector<8x128xi32>
    %60 = arith.shrui %58, %59 : vector<8x128xi32>
    %61 = arith.xori %58, %60 : vector<8x128xi32>
    %c2146121005_i32_20 = arith.constant 2146121005 : i32
    %62 = vector.broadcast %c2146121005_i32_20 : i32 to vector<8x128xi32>
    %63 = arith.muli %61, %62 : vector<8x128xi32>
    %c15_i32_21 = arith.constant 15 : i32
    %64 = vector.broadcast %c15_i32_21 : i32 to vector<8x128xi32>
    %65 = arith.shrui %63, %64 : vector<8x128xi32>
    %66 = arith.xori %63, %65 : vector<8x128xi32>
    %c-2073254261_i32_22 = arith.constant -2073254261 : i32
    %67 = vector.broadcast %c-2073254261_i32_22 : i32 to vector<8x128xi32>
    %68 = arith.muli %66, %67 : vector<8x128xi32>
    %c16_i32_23 = arith.constant 16 : i32
    %69 = vector.broadcast %c16_i32_23 : i32 to vector<8x128xi32>
    %70 = arith.shrui %68, %69 : vector<8x128xi32>
    %71 = arith.xori %68, %70 : vector<8x128xi32>
    %c429496730_i32_24 = arith.constant 429496730 : i32
    %72 = vector.broadcast %c429496730_i32_24 : i32 to vector<8x128xi32>
    %73 = arith.cmpi uge, %71, %72 : vector<8x128xi32>
    %cst_25 = arith.constant 1.11111116 : f32
    %74 = vector.broadcast %cst_25 : f32 to vector<8x128xf32>
    %75 = arith.mulf %54, %74 : vector<8x128xf32>
    %cst_26 = arith.constant 0.000000e+00 : f32
    %76 = vector.broadcast %cst_26 : f32 to vector<8x128xf32>
    %77 = arith.select %73, %75, %76 : vector<8x128xi1>, vector<8x128xf32>
    %c0_27 = arith.constant 0 : index
    %c0_28 = arith.constant 0 : index
    %78 = vector.load %arg7[%c0_27, %c0_28] : memref<128x128xf32, #tpu.memory_space<vmem>>, vector<128x128xf32>
    %cst_29 = arith.constant dense<0.000000e+00> : vector<8x128xf32>
    %79 = tpu.matmul %77, %78, %cst_29 {dimension_numbers = #tpu.dot_dimension_numbers<[1], [0], [0], [1], [0, 0, 1, 1], [], []>} : vector<8x128xf32>, vector<128x128xf32>, vector<8x128xf32> -> vector<8x128xf32>
    %c0_30 = arith.constant 0 : index
    %c0_31 = arith.constant 0 : index
    %80 = vector.load %arg8[%c0_30, %c0_31] : memref<1x128xf32, #tpu.memory_space<vmem>>, vector<1x128xf32>
    %81 = vector.broadcast %80 : vector<1x128xf32> to vector<8x128xf32>
    %82 = arith.addf %79, %81 : vector<8x128xf32>
    %cst_32 = arith.constant 0.000000e+00 : f32
    %83 = vector.broadcast %cst_32 : f32 to vector<8x128xf32>
    %84 = arith.cmpf oge, %82, %83 : vector<8x128xf32>
    %cst_33 = arith.constant 0.00999999977 : f32
    %85 = vector.broadcast %cst_33 : f32 to vector<8x128xf32>
    %86 = arith.mulf %85, %82 : vector<8x128xf32>
    %87 = arith.select %84, %82, %86 : vector<8x128xi1>, vector<8x128xf32>
    %c3_i32 = arith.constant 3 : i32
    %c-1640531527_i32_34 = arith.constant -1640531527 : i32
    %88 = arith.muli %c3_i32, %c-1640531527_i32_34 : i32
    %89 = arith.xori %0, %88 : i32
    %90 = vector.broadcast %89 : i32 to vector<8x128xi32>
    %91 = arith.xori %90, %10 : vector<8x128xi32>
    %c16_i32_35 = arith.constant 16 : i32
    %92 = vector.broadcast %c16_i32_35 : i32 to vector<8x128xi32>
    %93 = arith.shrui %91, %92 : vector<8x128xi32>
    %94 = arith.xori %91, %93 : vector<8x128xi32>
    %c2146121005_i32_36 = arith.constant 2146121005 : i32
    %95 = vector.broadcast %c2146121005_i32_36 : i32 to vector<8x128xi32>
    %96 = arith.muli %94, %95 : vector<8x128xi32>
    %c15_i32_37 = arith.constant 15 : i32
    %97 = vector.broadcast %c15_i32_37 : i32 to vector<8x128xi32>
    %98 = arith.shrui %96, %97 : vector<8x128xi32>
    %99 = arith.xori %96, %98 : vector<8x128xi32>
    %c-2073254261_i32_38 = arith.constant -2073254261 : i32
    %100 = vector.broadcast %c-2073254261_i32_38 : i32 to vector<8x128xi32>
    %101 = arith.muli %99, %100 : vector<8x128xi32>
    %c16_i32_39 = arith.constant 16 : i32
    %102 = vector.broadcast %c16_i32_39 : i32 to vector<8x128xi32>
    %103 = arith.shrui %101, %102 : vector<8x128xi32>
    %104 = arith.xori %101, %103 : vector<8x128xi32>
    %c429496730_i32_40 = arith.constant 429496730 : i32
    %105 = vector.broadcast %c429496730_i32_40 : i32 to vector<8x128xi32>
    %106 = arith.cmpi uge, %104, %105 : vector<8x128xi32>
    %cst_41 = arith.constant 1.11111116 : f32
    %107 = vector.broadcast %cst_41 : f32 to vector<8x128xf32>
    %108 = arith.mulf %87, %107 : vector<8x128xf32>
    %cst_42 = arith.constant 0.000000e+00 : f32
    %109 = vector.broadcast %cst_42 : f32 to vector<8x128xf32>
    %110 = arith.select %106, %108, %109 : vector<8x128xi1>, vector<8x128xf32>
    %c0_43 = arith.constant 0 : index
    %c0_44 = arith.constant 0 : index
    %111 = vector.load %arg9[%c0_43, %c0_44] : memref<128x128xf32, #tpu.memory_space<vmem>>, vector<128x128xf32>
    %cst_45 = arith.constant dense<0.000000e+00> : vector<8x128xf32>
    %112 = tpu.matmul %110, %111, %cst_45 {dimension_numbers = #tpu.dot_dimension_numbers<[1], [0], [0], [1], [0, 0, 1, 1], [], []>} : vector<8x128xf32>, vector<128x128xf32>, vector<8x128xf32> -> vector<8x128xf32>
    %c0_46 = arith.constant 0 : index
    %c0_47 = arith.constant 0 : index
    %113 = vector.load %arg10[%c0_46, %c0_47] : memref<1x128xf32, #tpu.memory_space<vmem>>, vector<1x128xf32>
    %114 = vector.broadcast %113 : vector<1x128xf32> to vector<8x128xf32>
    %115 = arith.addf %112, %114 : vector<8x128xf32>
    %cst_48 = arith.constant 0.000000e+00 : f32
    %116 = vector.broadcast %cst_48 : f32 to vector<8x128xf32>
    %117 = arith.cmpf oge, %115, %116 : vector<8x128xf32>
    %cst_49 = arith.constant 0.00999999977 : f32
    %118 = vector.broadcast %cst_49 : f32 to vector<8x128xf32>
    %119 = arith.mulf %118, %115 : vector<8x128xf32>
    %120 = arith.select %117, %115, %119 : vector<8x128xi1>, vector<8x128xf32>
    %c4_i32 = arith.constant 4 : i32
    %c-1640531527_i32_50 = arith.constant -1640531527 : i32
    %121 = arith.muli %c4_i32, %c-1640531527_i32_50 : i32
    %122 = arith.xori %0, %121 : i32
    %123 = vector.broadcast %122 : i32 to vector<8x128xi32>
    %124 = arith.xori %123, %10 : vector<8x128xi32>
    %c16_i32_51 = arith.constant 16 : i32
    %125 = vector.broadcast %c16_i32_51 : i32 to vector<8x128xi32>
    %126 = arith.shrui %124, %125 : vector<8x128xi32>
    %127 = arith.xori %124, %126 : vector<8x128xi32>
    %c2146121005_i32_52 = arith.constant 2146121005 : i32
    %128 = vector.broadcast %c2146121005_i32_52 : i32 to vector<8x128xi32>
    %129 = arith.muli %127, %128 : vector<8x128xi32>
    %c15_i32_53 = arith.constant 15 : i32
    %130 = vector.broadcast %c15_i32_53 : i32 to vector<8x128xi32>
    %131 = arith.shrui %129, %130 : vector<8x128xi32>
    %132 = arith.xori %129, %131 : vector<8x128xi32>
    %c-2073254261_i32_54 = arith.constant -2073254261 : i32
    %133 = vector.broadcast %c-2073254261_i32_54 : i32 to vector<8x128xi32>
    %134 = arith.muli %132, %133 : vector<8x128xi32>
    %c16_i32_55 = arith.constant 16 : i32
    %135 = vector.broadcast %c16_i32_55 : i32 to vector<8x128xi32>
    %136 = arith.shrui %134, %135 : vector<8x128xi32>
    %137 = arith.xori %134, %136 : vector<8x128xi32>
    %c429496730_i32_56 = arith.constant 429496730 : i32
    %138 = vector.broadcast %c429496730_i32_56 : i32 to vector<8x128xi32>
    %139 = arith.cmpi uge, %137, %138 : vector<8x128xi32>
    %cst_57 = arith.constant 1.11111116 : f32
    %140 = vector.broadcast %cst_57 : f32 to vector<8x128xf32>
    %141 = arith.mulf %120, %140 : vector<8x128xf32>
    %cst_58 = arith.constant 0.000000e+00 : f32
    %142 = vector.broadcast %cst_58 : f32 to vector<8x128xf32>
    %143 = arith.select %139, %141, %142 : vector<8x128xi1>, vector<8x128xf32>
    %c0_59 = arith.constant 0 : index
    %c0_60 = arith.constant 0 : index
    %144 = vector.load %arg11[%c0_59, %c0_60] : memref<128x128xf32, #tpu.memory_space<vmem>>, vector<128x128xf32>
    %cst_61 = arith.constant dense<0.000000e+00> : vector<8x128xf32>
    %145 = tpu.matmul %143, %144, %cst_61 {dimension_numbers = #tpu.dot_dimension_numbers<[1], [0], [0], [1], [0, 0, 1, 1], [], []>} : vector<8x128xf32>, vector<128x128xf32>, vector<8x128xf32> -> vector<8x128xf32>
    %c0_62 = arith.constant 0 : index
    %c0_63 = arith.constant 0 : index
    %146 = vector.load %arg12[%c0_62, %c0_63] : memref<1x128xf32, #tpu.memory_space<vmem>>, vector<1x128xf32>
    %147 = vector.broadcast %146 : vector<1x128xf32> to vector<8x128xf32>
    %148 = arith.addf %145, %147 : vector<8x128xf32>
    %cst_64 = arith.constant 0.000000e+00 : f32
    %149 = vector.broadcast %cst_64 : f32 to vector<8x128xf32>
    %150 = arith.cmpf oge, %148, %149 : vector<8x128xf32>
    %cst_65 = arith.constant 0.00999999977 : f32
    %151 = vector.broadcast %cst_65 : f32 to vector<8x128xf32>
    %152 = arith.mulf %151, %148 : vector<8x128xf32>
    %153 = arith.select %150, %148, %152 : vector<8x128xi1>, vector<8x128xf32>
    %c5_i32 = arith.constant 5 : i32
    %c-1640531527_i32_66 = arith.constant -1640531527 : i32
    %154 = arith.muli %c5_i32, %c-1640531527_i32_66 : i32
    %155 = arith.xori %0, %154 : i32
    %156 = vector.broadcast %155 : i32 to vector<8x128xi32>
    %157 = arith.xori %156, %10 : vector<8x128xi32>
    %c16_i32_67 = arith.constant 16 : i32
    %158 = vector.broadcast %c16_i32_67 : i32 to vector<8x128xi32>
    %159 = arith.shrui %157, %158 : vector<8x128xi32>
    %160 = arith.xori %157, %159 : vector<8x128xi32>
    %c2146121005_i32_68 = arith.constant 2146121005 : i32
    %161 = vector.broadcast %c2146121005_i32_68 : i32 to vector<8x128xi32>
    %162 = arith.muli %160, %161 : vector<8x128xi32>
    %c15_i32_69 = arith.constant 15 : i32
    %163 = vector.broadcast %c15_i32_69 : i32 to vector<8x128xi32>
    %164 = arith.shrui %162, %163 : vector<8x128xi32>
    %165 = arith.xori %162, %164 : vector<8x128xi32>
    %c-2073254261_i32_70 = arith.constant -2073254261 : i32
    %166 = vector.broadcast %c-2073254261_i32_70 : i32 to vector<8x128xi32>
    %167 = arith.muli %165, %166 : vector<8x128xi32>
    %c16_i32_71 = arith.constant 16 : i32
    %168 = vector.broadcast %c16_i32_71 : i32 to vector<8x128xi32>
    %169 = arith.shrui %167, %168 : vector<8x128xi32>
    %170 = arith.xori %167, %169 : vector<8x128xi32>
    %c429496730_i32_72 = arith.constant 429496730 : i32
    %171 = vector.broadcast %c429496730_i32_72 : i32 to vector<8x128xi32>
    %172 = arith.cmpi uge, %170, %171 : vector<8x128xi32>
    %cst_73 = arith.constant 1.11111116 : f32
    %173 = vector.broadcast %cst_73 : f32 to vector<8x128xf32>
    %174 = arith.mulf %153, %173 : vector<8x128xf32>
    %cst_74 = arith.constant 0.000000e+00 : f32
    %175 = vector.broadcast %cst_74 : f32 to vector<8x128xf32>
    %176 = arith.select %172, %174, %175 : vector<8x128xi1>, vector<8x128xf32>
    %c0_75 = arith.constant 0 : index
    %c0_76 = arith.constant 0 : index
    %177 = vector.load %arg13[%c0_75, %c0_76] : memref<128x128xf32, #tpu.memory_space<vmem>>, vector<128x128xf32>
    %cst_77 = arith.constant dense<0.000000e+00> : vector<8x128xf32>
    %178 = tpu.matmul %176, %177, %cst_77 {dimension_numbers = #tpu.dot_dimension_numbers<[1], [0], [0], [1], [0, 0, 1, 1], [], []>} : vector<8x128xf32>, vector<128x128xf32>, vector<8x128xf32> -> vector<8x128xf32>
    %c0_78 = arith.constant 0 : index
    %c0_79 = arith.constant 0 : index
    %179 = vector.load %arg14[%c0_78, %c0_79] : memref<1x128xf32, #tpu.memory_space<vmem>>, vector<1x128xf32>
    %180 = vector.broadcast %179 : vector<1x128xf32> to vector<8x128xf32>
    %181 = arith.addf %178, %180 : vector<8x128xf32>
    %cst_80 = arith.constant 0.000000e+00 : f32
    %182 = vector.broadcast %cst_80 : f32 to vector<8x128xf32>
    %183 = arith.maximumf %181, %182 : vector<8x128xf32>
    %c0_81 = arith.constant 0 : index
    %c0_82 = arith.constant 0 : index
    %184 = vector.load %arg15[%c0_81, %c0_82] : memref<8x128xf32, #tpu.memory_space<vmem>>, vector<8x128xf32>
    tpu.vector_store %arg15[%c0_81, %c0_82], %183 {strides = array<i32>} : memref<8x128xf32, #tpu.memory_space<vmem>>, vector<8x128xf32>,
    return
  }
  func.func @transform_0(%arg0: i32) -> i32 {
    %c0_i32 = arith.constant 0 : i32
    %c0_i32_0 = arith.constant 0 : i32
    return %c0_i32 : i32
  }
  func.func @transform_1(%arg0: i32) -> (i32, i32) {
    %c0_i32 = arith.constant 0 : i32
    %c0_i32_0 = arith.constant 0 : i32
    return %arg0, %c0_i32 : i32, i32
  }
  func.func @transform_2(%arg0: i32) -> (i32, i32) {
    %c0_i32 = arith.constant 0 : i32
    %c0_i32_0 = arith.constant 0 : i32
    %c0_i32_1 = arith.constant 0 : i32
    return %c0_i32, %c0_i32_0 : i32, i32
  }
  func.func @transform_3(%arg0: i32) -> (i32, i32) {
    %c0_i32 = arith.constant 0 : i32
    %c0_i32_0 = arith.constant 0 : i32
    %c0_i32_1 = arith.constant 0 : i32
    return %c0_i32, %c0_i32_0 : i32, i32
  }
  func.func @transform_4(%arg0: i32) -> (i32, i32) {
    %c0_i32 = arith.constant 0 : i32
    %c0_i32_0 = arith.constant 0 : i32
    %c0_i32_1 = arith.constant 0 : i32
    return %c0_i32, %c0_i32_0 : i32, i32
  }
  func.func @transform_5(%arg0: i32) -> (i32, i32) {
    %c0_i32 = arith.constant 0 : i32
    %c0_i32_0 = arith.constant 0 : i32
    %c0_i32_1 = arith.constant 0 : i32
    return %c0_i32, %c0_i32_0 : i32, i32
  }
  func.func @transform_6(%arg0: i32) -> (i32, i32) {
    %c0_i32 = arith.constant 0 : i32
    %c0_i32_0 = arith.constant 0 : i32
    %c0_i32_1 = arith.constant 0 : i32
    return %c0_i32, %c0_i32_0 : i32, i32
  }
  func.func @transform_7(%arg0: i32) -> (i32, i32) {
    %c0_i32 = arith.constant 0 : i32
    %c0_i32_0 = arith.constant 0 : i32
    %c0_i32_1 = arith.constant 0 : i32
    return %c0_i32, %c0_i32_0 : i32, i32
  }
  func.func @transform_8(%arg0: i32) -> (i32, i32) {
    %c0_i32 = arith.constant 0 : i32
    %c0_i32_0 = arith.constant 0 : i32
    %c0_i32_1 = arith.constant 0 : i32
    return %c0_i32, %c0_i32_0 : i32, i32
  }
  func.func @transform_9(%arg0: i32) -> (i32, i32) {
    %c0_i32 = arith.constant 0 : i32
    %c0_i32_0 = arith.constant 0 : i32
    %c0_i32_1 = arith.constant 0 : i32
    return %c0_i32, %c0_i32_0 : i32, i32
  }
  func.func @transform_10(%arg0: i32) -> (i32, i32) {
    %c0_i32 = arith.constant 0 : i32
    %c0_i32_0 = arith.constant 0 : i32
    %c0_i32_1 = arith.constant 0 : i32
    return %c0_i32, %c0_i32_0 : i32, i32
  }
  func.func @transform_11(%arg0: i32) -> (i32, i32) {
    %c0_i32 = arith.constant 0 : i32
    %c0_i32_0 = arith.constant 0 : i32
    %c0_i32_1 = arith.constant 0 : i32
    return %c0_i32, %c0_i32_0 : i32, i32
  }
  func.func @transform_12(%arg0: i32) -> (i32, i32) {
    %c0_i32 = arith.constant 0 : i32
    %c0_i32_0 = arith.constant 0 : i32
    %c0_i32_1 = arith.constant 0 : i32
    return %c0_i32, %c0_i32_0 : i32, i32
  }
  func.func @transform_13(%arg0: i32) -> (i32, i32) {
    %c0_i32 = arith.constant 0 : i32
    %c0_i32_0 = arith.constant 0 : i32
    %c0_i32_1 = arith.constant 0 : i32
    return %c0_i32, %c0_i32_0 : i32, i32
  }
  func.func @transform_14(%arg0: i32) -> (i32, i32) {
    %c0_i32 = arith.constant 0 : i32
    %c0_i32_0 = arith.constant 0 : i32
    return %arg0, %c0_i32 : i32, i32
  }
}

</mosaic_0001>

<llo_original>
// kernel: tpu_custom_call.1
$region0: #{tpu_custom_call.1}
  #allocation0 [shape = 'u32[]', space=smem, size = 0x4, offset = 0x4, fixed_abs, tag = 'smem constant byte address 0x4 - core index']
  #allocation1 [shape = 'u32[72,128]{1,0:T(1,128)}', space=vmem, size = 0x9000, scoped, tag = 'internal scratch']
  #allocation2 [shape = 's32[1]{0:T(128)S(6)}', space=smem, size = 0x200, scoped, tag = 'scoped memory for tpu_custom_call.1']
  %s0 = inlined_call_operand.<no memory space> [shape: s32[1], index: 0, kind: input, shape index: {}]
  %s1 = inlined_call_operand.hbm [shape: f32[8,128], index: 1, kind: input, shape index: {}]
  %s2 = inlined_call_operand.hbm [shape: f32[128,128], index: 2, kind: input, shape index: {}]
  %s3 = inlined_call_operand.vmem [shape: f32[1,128], index: 3, kind: input, shape index: {}]
  %s4 = inlined_call_operand.hbm [shape: f32[128,128], index: 4, kind: input, shape index: {}]
  %s5 = inlined_call_operand.vmem [shape: f32[1,128], index: 5, kind: input, shape index: {}]
  %s6 = inlined_call_operand.hbm [shape: f32[128,128], index: 6, kind: input, shape index: {}]
  %s7 = inlined_call_operand.vmem [shape: f32[1,128], index: 7, kind: input, shape index: {}]
  %s8 = inlined_call_operand.hbm [shape: f32[128,128], index: 8, kind: input, shape index: {}]
  %s9 = inlined_call_operand.vmem [shape: f32[1,128], index: 9, kind: input, shape index: {}]
  %s10 = inlined_call_operand.hbm [shape: f32[128,128], index: 10, kind: input, shape index: {}]
  %s11 = inlined_call_operand.vmem [shape: f32[1,128], index: 11, kind: input, shape index: {}]
  %s12 = inlined_call_operand.hbm [shape: f32[128,128], index: 12, kind: input, shape index: {}]
  %s13 = inlined_call_operand.vmem [shape: f32[1,128], index: 13, kind: input, shape index: {}]
  %s14 = inlined_call_operand.hbm [shape: f32[8,128], index: 14, kind: output, shape index: {}]
  %s15 = sld [smem:[#allocation0]]
  $region94: #{tpu_custom_call.1} parent=0
    _
  %s17 = ssub.s32 1, %s15
  %s18 = scalar_select 0, %s17, %s15
  %19 = sst [smem:[#allocation2]] %s0
  $region1: #{tpu_custom_call.1} parent=0
    #allocation3 [shape = 'u8[4096]{0}', space=vmem, size = 0x1000, scoped, tag = 'input window, operand 1, single buffered']
    #allocation4 [shape = 's32[1]{0}', space=sflag, size = 0x4, scoped, tag = 'scoped memory for tpu_custom_call.1']
    #allocation5 [shape = 's32[1]{0}', space=sflag, size = 0x4, scoped, tag = 'scoped memory for tpu_custom_call.1']
    #allocation6 [shape = 'u8[65536]{0}', space=vmem, size = 0x10000, scoped, tag = 'input window, operand 2, single buffered']
    #allocation7 [shape = 's32[1]{0}', space=sflag, size = 0x4, scoped, tag = 'scoped memory for tpu_custom_call.1']
    #allocation8 [shape = 'u8[65536]{0}', space=vmem, size = 0x10000, scoped, tag = 'input window, operand 4, single buffered']
    #allocation9 [shape = 'u8[65536]{0}', space=vmem, size = 0x10000, scoped, tag = 'input window, operand 6, single buffered']
    #allocation10 [shape = 's32[1]{0}', space=sflag, size = 0x4, scoped, tag = 'scoped memory for tpu_custom_call.1']
    #allocation11 [shape = 'u8[65536]{0}', space=vmem, size = 0x10000, scoped, tag = 'input window, operand 8, single buffered']
    #allocation12 [shape = 'u8[65536]{0}', space=vmem, size = 0x10000, scoped, tag = 'input window, operand 10, single buffered']
    #allocation13 [shape = 's32[1]{0}', space=sflag, size = 0x4, scoped, tag = 'scoped memory for tpu_custom_call.1']
    #allocation14 [shape = 'u8[65536]{0}', space=vmem, size = 0x10000, scoped, tag = 'input window, operand 12, single buffered']
    #allocation15 [shape = 'u8[4096]{0}', space=vmem, size = 0x1000, scoped, tag = 'output window, operand 0, single buffered']
    %20 = vsyncpa [#allocation4], 0
    %21 = vsyncpa [#allocation7], 0
    %22 = vsyncpa [#allocation10], 0
    %23 = vsyncpa [#allocation13], 0
    %24 = vsyncpa [#allocation5], 0
    // Predicated region
    $region2: #{tpu_custom_call.1} parent=1 // pred_check
      _
    $region3: #{tpu_custom_call.1} parent=1 // pred_check_branch
      %26 = sbr.rel (0) target = $region5
    $region4: #{tpu_custom_call.1} parent=1 // pred_region
      _
    $region5: #{tpu_custom_call.1} parent=1 // pred_fallthru
      _
    // Predicated region
    $region6: #{tpu_custom_call.1} parent=1 // pred_check
      _
    $region7: #{tpu_custom_call.1} parent=1 // pred_check_branch
      %28 = sbr.rel (0) target = $region9
    $region8: #{tpu_custom_call.1} parent=1 // pred_region
      %30 = vsyncadd [#allocation4], 0
      %s32 = sshll.u32 %s1, 4
      %s33 = int_to_ptr.hbm [resolvable:$true] %s32
      %s34 = sshll.u32 [#allocation3], 4
      %s35 = int_to_ptr.vmem [resolvable:$true] %s34
      %37 = dma.hbm_to_vmem [thread:$0]  %s33, 128, %s35, [#allocation4]
    $region9: #{tpu_custom_call.1} parent=1 // pred_fallthru
      _
    // Predicated region
    $region10: #{tpu_custom_call.1} parent=1 // pred_check
      _
    $region11: #{tpu_custom_call.1} parent=1 // pred_check_branch
      %39 = sbr.rel (0) target = $region13
    $region12: #{tpu_custom_call.1} parent=1 // pred_region
      %41 = vsyncadd [#allocation7], 0
      %s42 = sshll.u32 %s2, 4
      %s43 = int_to_ptr.hbm [resolvable:$true] %s42
      %s44 = sshll.u32 [#allocation6], 4
      %s45 = int_to_ptr.vmem [resolvable:$true] %s44
      %50 = dma.hbm_to_vmem [thread:$0]  %s43, 2048, %s45, [#allocation7], 128, 128, 8
    $region13: #{tpu_custom_call.1} parent=1 // pred_fallthru
      _
    // Predicated region
    $region14: #{tpu_custom_call.1} parent=1 // pred_check
      _
    $region15: #{tpu_custom_call.1} parent=1 // pred_check_branch
      %52 = sbr.rel (0) target = $region17
    $region16: #{tpu_custom_call.1} parent=1 // pred_region
      _
    $region17: #{tpu_custom_call.1} parent=1 // pred_fallthru
      _
    // Predicated region
    $region18: #{tpu_custom_call.1} parent=1 // pred_check
      _
    $region19: #{tpu_custom_call.1} parent=1 // pred_check_branch
      %54 = sbr.rel (0) target = $region21
    $region20: #{tpu_custom_call.1} parent=1 // pred_region
      %56 = vsyncadd [#allocation7], 0
      %s57 = sshll.u32 %s4, 4
      %s58 = int_to_ptr.hbm [resolvable:$true] %s57
      %s59 = sshll.u32 [#allocation8], 4
      %s60 = int_to_ptr.vmem [resolvable:$true] %s59
      %65 = dma.hbm_to_vmem [thread:$0]  %s58, 2048, %s60, [#allocation7], 128, 128, 8
    $region21: #{tpu_custom_call.1} parent=1 // pred_fallthru
      _
    // Predicated region
    $region22: #{tpu_custom_call.1} parent=1 // pred_check
      _
    $region23: #{tpu_custom_call.1} parent=1 // pred_check_branch
      %67 = sbr.rel (0) target = $region25
    $region24: #{tpu_custom_call.1} parent=1 // pred_region
      _
    $region25: #{tpu_custom_call.1} parent=1 // pred_fallthru
      _
    // Predicated region
    $region26: #{tpu_custom_call.1} parent=1 // pred_check
      _
    $region27: #{tpu_custom_call.1} parent=1 // pred_check_branch
      %69 = sbr.rel (0) target = $region29
    $region28: #{tpu_custom_call.1} parent=1 // pred_region
      %71 = vsyncadd [#allocation10], 0
      %s72 = sshll.u32 %s6, 4
      %s73 = int_to_ptr.hbm [resolvable:$true] %s72
      %s74 = sshll.u32 [#allocation9], 4
      %s75 = int_to_ptr.vmem [resolvable:$true] %s74
      %80 = dma.hbm_to_vmem [thread:$0]  %s73, 2048, %s75, [#allocation10], 128, 128, 8
    $region29: #{tpu_custom_call.1} parent=1 // pred_fallthru
      _
    // Predicated region
    $region30: #{tpu_custom_call.1} parent=1 // pred_check
      _
    $region31: #{tpu_custom_call.1} parent=1 // pred_check_branch
      %82 = sbr.rel (0) target = $region33
    $region32: #{tpu_custom_call.1} parent=1 // pred_region
      _
    $region33: #{tpu_custom_call.1} parent=1 // pred_fallthru
      _
    // Predicated region
    $region34: #{tpu_custom_call.1} parent=1 // pred_check
      _
    $region35: #{tpu_custom_call.1} parent=1 // pred_check_branch
      %84 = sbr.rel (0) target = $region37
    $region36: #{tpu_custom_call.1} parent=1 // pred_region
      %86 = vsyncadd [#allocation10], 0
      %s87 = sshll.u32 %s8, 4
      %s88 = int_to_ptr.hbm [resolvable:$true] %s87
      %s89 = sshll.u32 [#allocation11], 4
      %s90 = int_to_ptr.vmem [resolvable:$true] %s89
      %95 = dma.hbm_to_vmem [thread:$0]  %s88, 2048, %s90, [#allocation10], 128, 128, 8
    $region37: #{tpu_custom_call.1} parent=1 // pred_fallthru
      _
    // Predicated region
    $region38: #{tpu_custom_call.1} parent=1 // pred_check
      _
    $region39: #{tpu_custom_call.1} parent=1 // pred_check_branch
      %97 = sbr.rel (0) target = $region41
    $region40: #{tpu_custom_call.1} parent=1 // pred_region
      _
    $region41: #{tpu_custom_call.1} parent=1 // pred_fallthru
      _
    // Predicated region
    $region42: #{tpu_custom_call.1} parent=1 // pred_check
      _
    $region43: #{tpu_custom_call.1} parent=1 // pred_check_branch
      %99 = sbr.rel (0) target = $region45
    $region44: #{tpu_custom_call.1} parent=1 // pred_region
      %101 = vsyncadd [#allocation13], 0
      %s102 = sshll.u32 %s10, 4
      %s103 = int_to_ptr.hbm [resolvable:$true] %s102
      %s104 = sshll.u32 [#allocation12], 4
      %s105 = int_to_ptr.vmem [resolvable:$true] %s104
      %110 = dma.hbm_to_vmem [thread:$0]  %s103, 2048, %s105, [#allocation13], 128, 128, 8
    $region45: #{tpu_custom_call.1} parent=1 // pred_fallthru
      _
    // Predicated region
    $region46: #{tpu_custom_call.1} parent=1 // pred_check
      _
    $region47: #{tpu_custom_call.1} parent=1 // pred_check_branch
      %112 = sbr.rel (0) target = $region49
    $region48: #{tpu_custom_call.1} parent=1 // pred_region
      _
    $region49: #{tpu_custom_call.1} parent=1 // pred_fallthru
      _
    // Predicated region
    $region50: #{tpu_custom_call.1} parent=1 // pred_check
      _
    $region51: #{tpu_custom_call.1} parent=1 // pred_check_branch
      %114 = sbr.rel (0) target = $region53
    $region52: #{tpu_custom_call.1} parent=1 // pred_region
      %116 = vsyncadd [#allocation13], 0
      %s117 = sshll.u32 %s12, 4
      %s118 = int_to_ptr.hbm [resolvable:$true] %s117
      %s119 = sshll.u32 [#allocation14], 4
      %s120 = int_to_ptr.vmem [resolvable:$true] %s119
      %125 = dma.hbm_to_vmem [thread:$0]  %s118, 2048, %s120, [#allocation13], 128, 128, 8
    $region53: #{tpu_custom_call.1} parent=1 // pred_fallthru
      _
    // Predicated region
    $region54: #{tpu_custom_call.1} parent=1 // pred_check
      _
    $region55: #{tpu_custom_call.1} parent=1 // pred_check_branch
      %127 = sbr.rel (0) target = $region57
    $region56: #{tpu_custom_call.1} parent=1 // pred_region
      _
    $region57: #{tpu_custom_call.1} parent=1 // pred_fallthru
      _
    // Predicated region
    $region58: #{tpu_custom_call.1} parent=1 // pred_check
      _
    $region59: #{tpu_custom_call.1} parent=1 // pred_check_branch
      %129 = sbr.rel (0) target = $region61
    $region60: #{tpu_custom_call.1} parent=1 // pred_region
      %131 = dma.done [#allocation4], 128
    $region61: #{tpu_custom_call.1} parent=1 // pred_fallthru
      _
    // Predicated region
    $region62: #{tpu_custom_call.1} parent=1 // pred_check
      _
    $region63: #{tpu_custom_call.1} parent=1 // pred_check_branch
      %133 = sbr.rel (0) target = $region65
    $region64: #{tpu_custom_call.1} parent=1 // pred_region
      %135 = dma.done [#allocation7], 2048
    $region65: #{tpu_custom_call.1} parent=1 // pred_fallthru
      _
    // Predicated region
    $region66: #{tpu_custom_call.1} parent=1 // pred_check
      _
    $region67: #{tpu_custom_call.1} parent=1 // pred_check_branch
      %137 = sbr.rel (0) target = $region69
    $region68: #{tpu_custom_call.1} parent=1 // pred_region
      %139 = dma.done [#allocation7], 2048
    $region69: #{tpu_custom_call.1} parent=1 // pred_fallthru
      _
    // Predicated region
    $region70: #{tpu_custom_call.1} parent=1 // pred_check
      _
    $region71: #{tpu_custom_call.1} parent=1 // pred_check_branch
      %141 = sbr.rel (0) target = $region73
    $region72: #{tpu_custom_call.1} parent=1 // pred_region
      %143 = dma.done [#allocation10], 2048
    $region73: #{tpu_custom_call.1} parent=1 // pred_fallthru
      _
    // Predicated region
    $region74: #{tpu_custom_call.1} parent=1 // pred_check
      _
    $region75: #{tpu_custom_call.1} parent=1 // pred_check_branch
      %145 = sbr.rel (0) target = $region77
    $region76: #{tpu_custom_call.1} parent=1 // pred_region
      %147 = dma.done [#allocation10], 2048
    $region77: #{tpu_custom_call.1} parent=1 // pred_fallthru
      _
    // Predicated region
    $region78: #{tpu_custom_call.1} parent=1 // pred_check
      _
    $region79: #{tpu_custom_call.1} parent=1 // pred_check_branch
      %149 = sbr.rel (0) target = $region81
    $region80: #{tpu_custom_call.1} parent=1 // pred_region
      %151 = dma.done [#allocation13], 2048
    $region81: #{tpu_custom_call.1} parent=1 // pred_fallthru
      _
    // Predicated region
    $region82: #{tpu_custom_call.1} parent=1 // pred_check
      _
    $region83: #{tpu_custom_call.1} parent=1 // pred_check_branch
      %153 = sbr.rel (0) target = $region85
    $region84: #{tpu_custom_call.1} parent=1 // pred_region
      %155 = dma.done [#allocation13], 2048
    $region85: #{tpu_custom_call.1} parent=1 // pred_fallthru
      _
    %s156 = sld [smem:[#allocation2]]
    %s157 = smul.u32 0, 8
    %v158 = vlaneseq
    %v159 = vshrl.u32 %v158, 7
    %v160 = vlaneseq
    %v161 = vand.u32 %v160, 127
    %v162 = vstv %s157
    %v163 = vadd.s32 %v159, %v162
    %v164 = vmul.u32 %v163, 2246822507
    %v165 = vmul.u32 %v161, 3266489909
    %v166 = vxor.u32 %v164, %v165
    %v167 = vld [vmem:[#allocation3] sm:$0xff]
    %v168 = vld [vmem:[#allocation6] sm:$0xff]
    %v169 = vld [vmem:[#allocation6 + $0x8] sm:$0xff]
    %v170 = vld [vmem:[#allocation6 + $0x10] sm:$0xff]
    %v171 = vld [vmem:[#allocation6 + $0x18] sm:$0xff]
    %v172 = vld [vmem:[#allocation6 + $0x20] sm:$0xff]
    %v173 = vld [vmem:[#allocation6 + $0x28] sm:$0xff]
    %v174 = vld [vmem:[#allocation6 + $0x30] sm:$0xff]
    %v175 = vld [vmem:[#allocation6 + $0x38] sm:$0xff]
    %v176 = vld [vmem:[#allocation6 + $0x40] sm:$0xff]
    %v177 = vld [vmem:[#allocation6 + $0x48] sm:$0xff]
    %v178 = vld [vmem:[#allocation6 + $0x50] sm:$0xff]
    %v179 = vld [vmem:[#allocation6 + $0x58] sm:$0xff]
    %v180 = vld [vmem:[#allocation6 + $0x60] sm:$0xff]
    %v181 = vld [vmem:[#allocation6 + $0x68] sm:$0xff]
    %v182 = vld [vmem:[#allocation6 + $0x70] sm:$0xff]
    %v183 = vld [vmem:[#allocation6 + $0x78] sm:$0xff]
    %v184 = vld [vmem:[%s3] sm:$0x1]
    %v186 = vperm.slane %v184, 0
    %188 = vmatpush.msra.mxu0 %v183
    %189 = vmatpush.msra.mxu0 %v182
    %190 = vmatpush.msra.mxu0 %v181
    %191 = vmatpush.msra.mxu0 %v180
    %192 = vmatpush.msra.mxu0 %v179
    %193 = vmatpush.msra.mxu0 %v178
    %194 = vmatpush.msra.mxu0 %v177
    %195 = vmatpush.msra.mxu0 %v176
    %196 = vmatpush.msra.mxu0 %v175
    %197 = vmatpush.msra.mxu0 %v174
    %198 = vmatpush.msra.mxu0 %v173
    %199 = vmatpush.msra.mxu0 %v172
    %200 = vmatpush.msra.mxu0 %v171
    %201 = vmatpush.msra.mxu0 %v170
    %202 = vmatpush.msra.mxu0 %v169
    %203 = vmatpush.msra.mxu0 %v168
    %204 = vmatmul.f32.gmra.mxu0 %v167
    %v205 = vpop.f32.mrf.mxu0
    %v206 = vadd.f32 %v186, %v205
    %207 = vdwg.mxu0
    %vm208 = vcmp.ge.f32.partialorder %v206, 0.0
    %v209 = vmul.f32 %v206, 0.01
    %v210 = vsel %vm208, %v206, %v209
    %s211 = sxor.u32 %s156, 2654435769
    %v212 = vstv %s211
    %v213 = vxor.u32 %v212, %v166
    %v214 = vshrl.u32 %v213, 16
    %v215 = vxor.u32 %v213, %v214
    %v216 = vmul.u32 %v215, 2146121005
    %v217 = vshrl.u32 %v216, 15
    %v218 = vxor.u32 %v216, %v217
    %v219 = vmul.u32 %v218, 2221713035
    %v220 = vshrl.u32 %v219, 16
    %v221 = vxor.u32 %v219, %v220
    %v222 = vadd.s32 %v221, 2147483648
    %vm224 = vcmp.ge.s32.totalorder %v222, 2576980378
    %v225 = vmul.f32 %v210, 1.1111112
    %v226 = vsel %vm224, %v225, 0.0
    %v227 = vld [vmem:[#allocation8] sm:$0xff]
    %v228 = vld [vmem:[#allocation8 + $0x8] sm:$0xff]
    %v229 = vld [vmem:[#allocation8 + $0x10] sm:$0xff]
    %v230 = vld [vmem:[#allocation8 + $0x18] sm:$0xff]
    %v231 = vld [vmem:[#allocation8 + $0x20] sm:$0xff]
    %v232 = vld [vmem:[#allocation8 + $0x28] sm:$0xff]
    %v233 = vld [vmem:[#allocation8 + $0x30] sm:$0xff]
    %v234 = vld [vmem:[#allocation8 + $0x38] sm:$0xff]
    %v235 = vld [vmem:[#allocation8 + $0x40] sm:$0xff]
    %v236 = vld [vmem:[#allocation8 + $0x48] sm:$0xff]
    %v237 = vld [vmem:[#allocation8 + $0x50] sm:$0xff]
    %v238 = vld [vmem:[#allocation8 + $0x58] sm:$0xff]
    %v239 = vld [vmem:[#allocation8 + $0x60] sm:$0xff]
    %v240 = vld [vmem:[#allocation8 + $0x68] sm:$0xff]
    %v241 = vld [vmem:[#allocation8 + $0x70] sm:$0xff]
    %v242 = vld [vmem:[#allocation8 + $0x78] sm:$0xff]
    %v243 = vld [vmem:[%s5] sm:$0x1]
    %v245 = vperm.slane %v243, 0
    %247 = vmatpush.msra.mxu0 %v242
    %248 = vmatpush.msra.mxu0 %v241
    %249 = vmatpush.msra.mxu0 %v240
    %250 = vmatpush.msra.mxu0 %v239
    %251 = vmatpush.msra.mxu0 %v238
    %252 = vmatpush.msra.mxu0 %v237
    %253 = vmatpush.msra.mxu0 %v236
    %254 = vmatpush.msra.mxu0 %v235
    %255 = vmatpush.msra.mxu0 %v234
    %256 = vmatpush.msra.mxu0 %v233
    %257 = vmatpush.msra.mxu0 %v232
    %258 = vmatpush.msra.mxu0 %v231
    %259 = vmatpush.msra.mxu0 %v230
    %260 = vmatpush.msra.mxu0 %v229
    %261 = vmatpush.msra.mxu0 %v228
    %262 = vmatpush.msra.mxu0 %v227
    %263 = vmatmul.f32.gmra.mxu0 %v226
    %v264 = vpop.f32.mrf.mxu0
    %v265 = vadd.f32 %v245, %v264
    %266 = vdwg.mxu0
    %vm267 = vcmp.ge.f32.partialorder %v265, 0.0
    %v268 = vmul.f32 %v265, 0.01
    %v269 = vsel %vm267, %v265, %v268
    %s270 = sxor.u32 %s156, 1013904242
    %v271 = vstv %s270
    %v272 = vxor.u32 %v271, %v166
    %v273 = vshrl.u32 %v272, 16
    %v274 = vxor.u32 %v272, %v273
    %v275 = vmul.u32 %v274, 2146121005
    %v276 = vshrl.u32 %v275, 15
    %v277 = vxor.u32 %v275, %v276
    %v278 = vmul.u32 %v277, 2221713035
    %v279 = vshrl.u32 %v278, 16
    %v280 = vxor.u32 %v278, %v279
    %v281 = vadd.s32 %v280, 2147483648
    %vm283 = vcmp.ge.s32.totalorder %v281, 2576980378
    %v284 = vmul.f32 %v269, 1.1111112
    %v285 = vsel %vm283, %v284, 0.0
    %v286 = vld [vmem:[#allocation9] sm:$0xff]
    %v287 = vld [vmem:[#allocation9 + $0x8] sm:$0xff]
    %v288 = vld [vmem:[#allocation9 + $0x10] sm:$0xff]
    %v289 = vld [vmem:[#allocation9 + $0x18] sm:$0xff]
    %v290 = vld [vmem:[#allocation9 + $0x20] sm:$0xff]
    %v291 = vld [vmem:[#allocation9 + $0x28] sm:$0xff]
    %v292 = vld [vmem:[#allocation9 + $0x30] sm:$0xff]
    %v293 = vld [vmem:[#allocation9 + $0x38] sm:$0xff]
    %v294 = vld [vmem:[#allocation9 + $0x40] sm:$0xff]
    %v295 = vld [vmem:[#allocation9 + $0x48] sm:$0xff]
    %v296 = vld [vmem:[#allocation9 + $0x50] sm:$0xff]
    %v297 = vld [vmem:[#allocation9 + $0x58] sm:$0xff]
    %v298 = vld [vmem:[#allocation9 + $0x60] sm:$0xff]
    %v299 = vld [vmem:[#allocation9 + $0x68] sm:$0xff]
    %v300 = vld [vmem:[#allocation9 + $0x70] sm:$0xff]
    %v301 = vld [vmem:[#allocation9 + $0x78] sm:$0xff]
    %v302 = vld [vmem:[%s7] sm:$0x1]
    %v304 = vperm.slane %v302, 0
    %306 = vmatpush.msra.mxu0 %v301
    %307 = vmatpush.msra.mxu0 %v300
    %308 = vmatpush.msra.mxu0 %v299
    %309 = vmatpush.msra.mxu0 %v298
    %310 = vmatpush.msra.mxu0 %v297
    %311 = vmatpush.msra.mxu0 %v296
    %312 = vmatpush.msra.mxu0 %v295
    %313 = vmatpush.msra.mxu0 %v294
    %314 = vmatpush.msra.mxu0 %v293
    %315 = vmatpush.msra.mxu0 %v292
    %316 = vmatpush.msra.mxu0 %v291
    %317 = vmatpush.msra.mxu0 %v290
    %318 = vmatpush.msra.mxu0 %v289
    %319 = vmatpush.msra.mxu0 %v288
    %320 = vmatpush.msra.mxu0 %v287
    %321 = vmatpush.msra.mxu0 %v286
    %322 = vmatmul.f32.gmra.mxu0 %v285
    %v323 = vpop.f32.mrf.mxu0
    %v324 = vadd.f32 %v304, %v323
    %325 = vdwg.mxu0
    %vm326 = vcmp.ge.f32.partialorder %v324, 0.0
    %v327 = vmul.f32 %v324, 0.01
    %v328 = vsel %vm326, %v324, %v327
    %s329 = sxor.u32 %s156, 3668340011
    %v330 = vstv %s329
    %v331 = vxor.u32 %v330, %v166
    %v332 = vshrl.u32 %v331, 16
    %v333 = vxor.u32 %v331, %v332
    %v334 = vmul.u32 %v333, 2146121005
    %v335 = vshrl.u32 %v334, 15
    %v336 = vxor.u32 %v334, %v335
    %v337 = vmul.u32 %v336, 2221713035
    %v338 = vshrl.u32 %v337, 16
    %v339 = vxor.u32 %v337, %v338
    %v340 = vadd.s32 %v339, 2147483648
    %vm342 = vcmp.ge.s32.totalorder %v340, 2576980378
    %v343 = vmul.f32 %v328, 1.1111112
    %v344 = vsel %vm342, %v343, 0.0
    %v345 = vld [vmem:[#allocation11] sm:$0xff]
    %v346 = vld [vmem:[#allocation11 + $0x8] sm:$0xff]
    %v347 = vld [vmem:[#allocation11 + $0x10] sm:$0xff]
    %v348 = vld [vmem:[#allocation11 + $0x18] sm:$0xff]
    %v349 = vld [vmem:[#allocation11 + $0x20] sm:$0xff]
    %v350 = vld [vmem:[#allocation11 + $0x28] sm:$0xff]
    %v351 = vld [vmem:[#allocation11 + $0x30] sm:$0xff]
    %v352 = vld [vmem:[#allocation11 + $0x38] sm:$0xff]
    %v353 = vld [vmem:[#allocation11 + $0x40] sm:$0xff]
    %v354 = vld [vmem:[#allocation11 + $0x48] sm:$0xff]
    %v355 = vld [vmem:[#allocation11 + $0x50] sm:$0xff]
    %v356 = vld [vmem:[#allocation11 + $0x58] sm:$0xff]
    %v357 = vld [vmem:[#allocation11 + $0x60] sm:$0xff]
    %v358 = vld [vmem:[#allocation11 + $0x68] sm:$0xff]
    %v359 = vld [vmem:[#allocation11 + $0x70] sm:$0xff]
    %v360 = vld [vmem:[#allocation11 + $0x78] sm:$0xff]
    %v361 = vld [vmem:[%s9] sm:$0x1]
    %v363 = vperm.slane %v361, 0
    %365 = vmatpush.msra.mxu0 %v360
    %366 = vmatpush.msra.mxu0 %v359
    %367 = vmatpush.msra.mxu0 %v358
    %368 = vmatpush.msra.mxu0 %v357
    %369 = vmatpush.msra.mxu0 %v356
    %370 = vmatpush.msra.mxu0 %v355
    %371 = vmatpush.msra.mxu0 %v354
    %372 = vmatpush.msra.mxu0 %v353
    %373 = vmatpush.msra.mxu0 %v352
    %374 = vmatpush.msra.mxu0 %v351
    %375 = vmatpush.msra.mxu0 %v350
    %376 = vmatpush.msra.mxu0 %v349
    %377 = vmatpush.msra.mxu0 %v348
    %378 = vmatpush.msra.mxu0 %v347
    %379 = vmatpush.msra.mxu0 %v346
    %380 = vmatpush.msra.mxu0 %v345
    %381 = vmatmul.f32.gmra.mxu0 %v344
    %v382 = vpop.f32.mrf.mxu0
    %v383 = vadd.f32 %v363, %v382
    %384 = vdwg.mxu0
    %vm385 = vcmp.ge.f32.partialorder %v383, 0.0
    %v386 = vmul.f32 %v383, 0.01
    %v387 = vsel %vm385, %v383, %v386
    %s388 = sxor.u32 %s156, 2027808484
    %v389 = vstv %s388
    %v390 = vxor.u32 %v389, %v166
    %v391 = vshrl.u32 %v390, 16
    %v392 = vxor.u32 %v390, %v391
    %v393 = vmul.u32 %v392, 2146121005
    %v394 = vshrl.u32 %v393, 15
    %v395 = vxor.u32 %v393, %v394
    %v396 = vmul.u32 %v395, 2221713035
    %v397 = vshrl.u32 %v396, 16
    %v398 = vxor.u32 %v396, %v397
    %v399 = vadd.s32 %v398, 2147483648
    %vm401 = vcmp.ge.s32.totalorder %v399, 2576980378
    %v402 = vmul.f32 %v387, 1.1111112
    %v403 = vsel %vm401, %v402, 0.0
    %v404 = vld [vmem:[#allocation12] sm:$0xff]
    %v405 = vld [vmem:[#allocation12 + $0x8] sm:$0xff]
    %v406 = vld [vmem:[#allocation12 + $0x10] sm:$0xff]
    %v407 = vld [vmem:[#allocation12 + $0x18] sm:$0xff]
    %v408 = vld [vmem:[#allocation12 + $0x20] sm:$0xff]
    %v409 = vld [vmem:[#allocation12 + $0x28] sm:$0xff]
    %v410 = vld [vmem:[#allocation12 + $0x30] sm:$0xff]
    %v411 = vld [vmem:[#allocation12 + $0x38] sm:$0xff]
    %v412 = vld [vmem:[#allocation12 + $0x40] sm:$0xff]
    %v413 = vld [vmem:[#allocation12 + $0x48] sm:$0xff]
    %v414 = vld [vmem:[#allocation12 + $0x50] sm:$0xff]
    %v415 = vld [vmem:[#allocation12 + $0x58] sm:$0xff]
    %v416 = vld [vmem:[#allocation12 + $0x60] sm:$0xff]
    %v417 = vld [vmem:[#allocation12 + $0x68] sm:$0xff]
    %v418 = vld [vmem:[#allocation12 + $0x70] sm:$0xff]
    %v419 = vld [vmem:[#allocation12 + $0x78] sm:$0xff]
    %v420 = vld [vmem:[%s11] sm:$0x1]
    %v422 = vperm.slane %v420, 0
    %424 = vmatpush.msra.mxu0 %v419
    %425 = vmatpush.msra.mxu0 %v418
    %426 = vmatpush.msra.mxu0 %v417
    %427 = vmatpush.msra.mxu0 %v416
    %428 = vmatpush.msra.mxu0 %v415
    %429 = vmatpush.msra.mxu0 %v414
    %430 = vmatpush.msra.mxu0 %v413
    %431 = vmatpush.msra.mxu0 %v412
    %432 = vmatpush.msra.mxu0 %v411
    %433 = vmatpush.msra.mxu0 %v410
    %434 = vmatpush.msra.mxu0 %v409
    %435 = vmatpush.msra.mxu0 %v408
    %436 = vmatpush.msra.mxu0 %v407
    %437 = vmatpush.msra.mxu0 %v406
    %438 = vmatpush.msra.mxu0 %v405
    %439 = vmatpush.msra.mxu0 %v404
    %440 = vmatmul.f32.gmra.mxu0 %v403
    %v441 = vpop.f32.mrf.mxu0
    %v442 = vadd.f32 %v422, %v441
    %443 = vdwg.mxu0
    %vm444 = vcmp.ge.f32.partialorder %v442, 0.0
    %v445 = vmul.f32 %v442, 0.01
    %v446 = vsel %vm444, %v442, %v445
    %s447 = sxor.u32 %s156, 387276957
    %v448 = vstv %s447
    %v449 = vxor.u32 %v448, %v166
    %v450 = vshrl.u32 %v449, 16
    %v451 = vxor.u32 %v449, %v450
    %v452 = vmul.u32 %v451, 2146121005
    %v453 = vshrl.u32 %v452, 15
    %v454 = vxor.u32 %v452, %v453
    %v455 = vmul.u32 %v454, 2221713035
    %v456 = vshrl.u32 %v455, 16
    %v457 = vxor.u32 %v455, %v456
    %v458 = vadd.s32 %v457, 2147483648
    %vm460 = vcmp.ge.s32.totalorder %v458, 2576980378
    %v461 = vmul.f32 %v446, 1.1111112
    %v462 = vsel %vm460, %v461, 0.0
    %v463 = vld [vmem:[#allocation14] sm:$0xff]
    %v464 = vld [vmem:[#allocation14 + $0x8] sm:$0xff]
    %v465 = vld [vmem:[#allocation14 + $0x10] sm:$0xff]
    %v466 = vld [vmem:[#allocation14 + $0x18] sm:$0xff]
    %v467 = vld [vmem:[#allocation14 + $0x20] sm:$0xff]
    %v468 = vld [vmem:[#allocation14 + $0x28] sm:$0xff]
    %v469 = vld [vmem:[#allocation14 + $0x30] sm:$0xff]
    %v470 = vld [vmem:[#allocation14 + $0x38] sm:$0xff]
    %v471 = vld [vmem:[#allocation14 + $0x40] sm:$0xff]
    %v472 = vld [vmem:[#allocation14 + $0x48] sm:$0xff]
    %v473 = vld [vmem:[#allocation14 + $0x50] sm:$0xff]
    %v474 = vld [vmem:[#allocation14 + $0x58] sm:$0xff]
    %v475 = vld [vmem:[#allocation14 + $0x60] sm:$0xff]
    %v476 = vld [vmem:[#allocation14 + $0x68] sm:$0xff]
    %v477 = vld [vmem:[#allocation14 + $0x70] sm:$0xff]
    %v478 = vld [vmem:[#allocation14 + $0x78] sm:$0xff]
    %v479 = vld [vmem:[%s13] sm:$0x1]
    %v481 = vperm.slane %v479, 0
    %483 = vmatpush.msra.mxu0 %v478
    %484 = vmatpush.msra.mxu0 %v477
    %485 = vmatpush.msra.mxu0 %v476
    %486 = vmatpush.msra.mxu0 %v475
    %487 = vmatpush.msra.mxu0 %v474
    %488 = vmatpush.msra.mxu0 %v473
    %489 = vmatpush.msra.mxu0 %v472
    %490 = vmatpush.msra.mxu0 %v471
    %491 = vmatpush.msra.mxu0 %v470
    %492 = vmatpush.msra.mxu0 %v469
    %493 = vmatpush.msra.mxu0 %v468
    %494 = vmatpush.msra.mxu0 %v467
    %495 = vmatpush.msra.mxu0 %v466
    %496 = vmatpush.msra.mxu0 %v465
    %497 = vmatpush.msra.mxu0 %v464
    %498 = vmatpush.msra.mxu0 %v463
    %499 = vmatmul.f32.gmra.mxu0 %v462
    %v500 = vpop.f32.mrf.mxu0
    %v501 = vadd.f32 %v481, %v500
    %502 = vdwg.mxu0
    %v503 = vmax.f32 %v501, 0.0
    %504 = vst [vmem:[#allocation15] sm:$0xff] %v503
    // Predicated region
    $region86: #{tpu_custom_call.1} parent=1 // pred_check
      _
    $region87: #{tpu_custom_call.1} parent=1 // pred_check_branch
      %506 = sbr.rel (0) target = $region89
    $region88: #{tpu_custom_call.1} parent=1 // pred_region
      %508 = vsyncadd [#allocation5], 0
      %s510 = sshll.u32 [#allocation15], 4
      %s511 = int_to_ptr.vmem [resolvable:$true] %s510
      %s512 = sshll.u32 %s14, 4
      %s513 = int_to_ptr.hbm [resolvable:$true] %s512
      %515 = dma.vmem_to_hbm [thread:$0]  %s511, 128, %s513, [#allocation5]
    $region89: #{tpu_custom_call.1} parent=1 // pred_fallthru
      _
    // Predicated region
    $region90: #{tpu_custom_call.1} parent=1 // pred_check
      _
    $region91: #{tpu_custom_call.1} parent=1 // pred_check_branch
      %517 = sbr.rel (0) target = $region93
    $region92: #{tpu_custom_call.1} parent=1 // pred_region
      %519 = dma.done [#allocation5], 128
    $region93: #{tpu_custom_call.1} parent=1 // pred_fallthru
      _
    %520 = vsyncpa [#allocation4], 1
    %521 = vsyncpa [#allocation7], 1
    %522 = vsyncpa [#allocation10], 1
    %523 = vsyncpa [#allocation13], 1
    %524 = vsyncpa [#allocation5], 1

</llo_original>
